<compile_context>
chip_gen: v7x
topology: tpu7x:2x2x1
jax: 0.10.0
libtpu: 0.0.40
codegen_flags: <defaults>
</compile_context>

<pallas_src>
from functools import partial

import jax
import jax.numpy as jnp
from jax.experimental import pallas as pl
from jax.experimental.pallas import tpu as pltpu


def _round_up(x, m):
    return ((x + m - 1) // m) * m


def _round_down(x, m):
    return (x // m) * m


def _tpu_generation():
    """Best-effort TPU generation (5, 6, 7, ...); 0 if unknown."""
    try:
        kind = jax.devices()[0].device_kind.lower()
    except Exception:
        return 0
    for g in (7, 6, 5, 4):
        if f"v{g}" in kind or f"tpu{g}" in kind:
            return g
    return 0


def _vmem_budget_bytes():
    """Conservative per-kernel VMEM budget (fits default scoped limits incl. v7x)."""
    try:
        cap = pltpu.get_tpu_info().vmem_capacity_bytes
    except Exception:
        cap = 64 * 1024 * 1024
    return min(cap // 4, 24 * 1024 * 1024)


def _default_tanh_dtype(gen=None):
    gen = _tpu_generation() if gen is None else gen
    # v6e / v7x: bf16 EUP -> bf16 tanh ~2x throughput on the saturating unit.
    # v5e (and unknown): no bf16 EUP/VPU -> keep f32 (bf16 would only add cast passes).
    return jnp.bfloat16 if gen >= 6 else jnp.float32


def lai_cnn_kernel(x_ref, w1_ref, b1_ref, w2_ref, b2_ref, o_ref, *, tanh_dtype):
    # x_ref:  (Nb, C_in, T)   pixels-in-lanes tile (Nb batch slabs)
    # w1_ref: (H1, C_in)      Scale2d-folded conv1 weight (f32)
    # b1_ref: (H1, 1)         Scale2d-folded conv1 bias   (f32)
    # w2_ref: (C_out, H1)     UnScale2d-folded conv2 weight (tanh_dtype)
    # b2_ref: (C_out, 1)      UnScale2d-folded conv2 bias   (f32)
    w1 = w1_ref[...]
    b1 = b1_ref[...]
    w2 = w2_ref[...]
    b2 = b2_ref[...]
    nb, c_in, _ = x_ref.shape

    for b in range(nb):                               # static unroll over batch slabs
        x = x_ref[b]                                  # (C_in, T)

        # conv1: tiny K=C_in contraction as broadcast FMAs on the VPU
        # (outer-product style (H1,1)*(1,T) -> (H1,T)); statically unrolled.
        acc = w1[:, 0:1] * x[0:1, :]
        for c in range(1, c_in):
            acc = acc + w1[:, c:c + 1] * x[c:c + 1, :]
        acc = acc + b1                                # (H1, T) f32

        # tanh on the EUP (the saturating unit). bf16 on v6e/v7x halves EUP work and
        # h stays bf16 (no VPU upcast pass) so the MXU sees a native bf16 operand.
        h = jnp.tanh(acc.astype(tanh_dtype))

        # conv2: K=H1 contraction stays on the MXU (its slot has large slack), f32 acc.
        # f32 path keeps the same (default) matmul precision as the pure-JAX reference;
        # bf16 path is a deliberate single-pass bf16 matmul.
        y = jnp.dot(w2, h, preferred_element_type=jnp.float32) + b2
        o_ref[b] = y.astype(o_ref.dtype)


def lai_cnn_forward(x_nchw, params, *, tile_pixels=None, tanh_dtype=None):
    """x_nchw: (N, C_in, H, W) float32.  Returns (N, C_out, H, W) float32.

    params (PyTorch layout):
      sw, sb: (C_in,)     Scale2d weight/bias   (== (1, C_in, 1, 1))
      w1, b1: (H1, C_in), (H1,)       Conv2d(in_ch, h1_dim, 1) (squeezed 1x1)
      w2, b2: (C_out, H1), (C_out,)   Conv2d(h1_dim, out_ch, 1)
      uw, ub: (C_out,)    UnScale2d weight/bias
    """
    sw, sb, w1, b1, w2, b2, uw, ub = params
    N, C_in, H, W = x_nchw.shape
    H1 = w1.shape[0]
    C_out = w2.shape[0]
    HW = H * W

    gen = _tpu_generation()
    if tanh_dtype is None:
        tanh_dtype = _default_tanh_dtype(gen)
    if tile_pixels is None:
        # v5e: single vector-store slot -> smaller tiles limit acc spill traffic.
        tile_pixels = 2048 if gen == 5 else 8192

    # ---- Fold Scale2d into conv1 and UnScale2d into conv2 (trace time, O(C*H1)) ----
    #   W1 @ (x*sw + sb) + b1    == (W1*sw) @ x + (W1@sb + b1)
    #   (W2 @ h + b2 - ub) / uw  == (W2/uw) @ h + (b2 - ub)/uw
    f32 = jnp.float32
    w1_eff = (w1 * sw.reshape(1, C_in)).astype(f32)                      # (H1, C_in)
    b1_eff = (w1 @ sb.reshape(C_in, 1) + b1.reshape(H1, 1)).astype(f32)  # (H1, 1)
    w2_eff = (w2 / uw.reshape(C_out, 1)).astype(f32)                     # (C_out, H1)
    b2_eff = ((b2.reshape(C_out, 1) - ub.reshape(C_out, 1))
              / uw.reshape(C_out, 1)).astype(f32)                        # (C_out, 1)
    # bf16 fast path feeds bf16 straight into the MXU (operand dtypes match h).
    w2_eff = w2_eff.astype(tanh_dtype)

    # ---- Tile / batch-block selection (H1-aware VMEM budget; no HBM pad pass) ----
    # Per pixel, per batch slab: double-buffered f32 I/O + ~3 live (H1,T) f32 temps.
    bytes_per_pixel = 4 * (2 * (C_in + C_out) + 3 * H1)
    t_budget = max(128, _round_down(_vmem_budget_bytes() // bytes_per_pixel, 128))
    t_max = max(128, min(_round_up(tile_pixels, 128), t_budget))

    hw128 = _round_up(HW, 128)
    if hw128 <= t_max:
        # Small image: whole image in one tile; pack several batch elements per grid
        # step so both v7x cores get work and per-step overhead is amortized.
        T = hw128
        n_tiles = 1
        Nb = max(1, min(N, 8, t_max // T))
    else:
        # Large image: pick tile count first, then the smallest lane-aligned T that
        # still covers HW -> padded compute <=128 px per tile, and Pallas clamps the
        # ragged boundary block (no wrapper-side jnp.pad / output slice HBM passes).
        n_tiles = pl.cdiv(HW, t_max)
        T = _round_up(pl.cdiv(HW, n_tiles), 128)
        Nb = 1

    x3 = x_nchw.reshape(N, C_in, HW)          # free: contiguous metadata reshape
    grid = (pl.cdiv(N, Nb), n_tiles)

    const_spec = lambda r, c: pl.BlockSpec((r, c), lambda n, j: (0, 0))

    out3 = pl.pallas_call(
        partial(lai_cnn_kernel, tanh_dtype=tanh_dtype),
        out_shape=jax.ShapeDtypeStruct((N, C_out, HW), x_nchw.dtype),
        grid_spec=pltpu.PrefetchScalarGridSpec(
            num_scalar_prefetch=0,
            grid=grid,
            in_specs=[
                pl.BlockSpec((Nb, C_in, T), lambda n, j: (n, 0, j)),   # x tile
                const_spec(H1, C_in),     # w1_eff
                const_spec(H1, 1),        # b1_eff
                const_spec(C_out, H1),    # w2_eff
                const_spec(C_out, 1),     # b2_eff
            ],
            out_specs=pl.BlockSpec((Nb, C_out, T), lambda n, j: (n, 0, j)),
        ),
        compiler_params=pltpu.CompilerParams(
            dimension_semantics=("parallel", "parallel")),
    )(x3, w1_eff, b1_eff, w2_eff, b2_eff)

    return out3.reshape(N, C_out, H, W)       # free: contiguous metadata reshape


def make_params(in_ch, h1_dim, out_ch):
    """Deterministic synthetic parameters (shapes mirror the PyTorch module)."""
    key = jax.random.PRNGKey(0)
    k = jax.random.split(key, 8)
    sw = 0.5 + 0.1 * jax.random.uniform(k[0], (in_ch,), jnp.float32)    # Scale2d.weight
    sb = 0.1 * jax.random.normal(k[1], (in_ch,), jnp.float32)           # Scale2d.bias
    w1 = 0.2 * jax.random.normal(k[2], (h1_dim, in_ch), jnp.float32)    # Conv2d(in,h1,1).weight
    b1 = 0.05 * jax.random.normal(k[3], (h1_dim,), jnp.float32)
    w2 = 0.2 * jax.random.normal(k[4], (out_ch, h1_dim), jnp.float32)   # Conv2d(h1,out,1).weight
    b2 = 0.05 * jax.random.normal(k[5], (out_ch,), jnp.float32)
    uw = 1.0 + 0.1 * jax.random.uniform(k[6], (out_ch,), jnp.float32)   # UnScale2d.weight (nonzero)
    ub = 0.1 * jax.random.normal(k[7], (out_ch,), jnp.float32)          # UnScale2d.bias
    return sw, sb, w1, b1, w2, b2, uw, ub


def lai_cnn_reference(x_nchw, params):
    """Pure-JAX reference matching the PyTorch module op-for-op."""
    sw, sb, w1, b1, w2, b2, uw, ub = params
    x = x_nchw * sw[None, :, None, None] + sb[None, :, None, None]
    h = jnp.einsum('oc,nchw->nohw', w1, x) + b1[None, :, None, None]
    h = jnp.tanh(h)
    y = jnp.einsum('oc,nchw->nohw', w2, h) + b2[None, :, None, None]
    return (y - ub[None, :, None, None]) / uw[None, :, None, None]


if __name__ == "__main__":
    N, IN_CH, H, W = 2, 4, 16, 16
    H1_DIM, OUT_CH = 32, 1

    key = jax.random.PRNGKey(0)
    x = jax.random.normal(key, (N, IN_CH, H, W), jnp.float32)
    params = make_params(IN_CH, H1_DIM, OUT_CH)

    ref = lai_cnn_reference(x, params)

    # Bit-accuracy check on the explicit f32 path (matches the PyTorch module numerics).
    out_f32 = jax.block_until_ready(lai_cnn_forward(x, params, tanh_dtype=jnp.float32))
    assert out_f32.shape == (N, OUT_CH, H, W), out_f32.shape
    assert jnp.allclose(out_f32, ref, atol=1e-5, rtol=1e-5), "f32 path mismatch vs reference"

    # Generation-tuned default path (bf16 tanh + bf16 MXU feed on v6e/v7x; f32 on v5e).
    out = jax.block_until_ready(lai_cnn_forward(x, params))
    assert out.shape == (N, OUT_CH, H, W), out.shape
    tol = 1e-5 if _default_tanh_dtype() == jnp.float32 else 5e-2
    assert jnp.allclose(out, ref, atol=tol, rtol=tol), "auto path mismatch vs reference"

    print("KERNEL_OK")
</pallas_src>

<mosaic_0001>
module attributes {stable_mosaic.version = 11 : i64} {
  func.func @lai_cnn_kernel(%arg0: i32, %arg1: i32, %arg2: memref<2x4x256xf32, #tpu.memory_space<vmem>>, %arg3: memref<32x4xf32, #tpu.memory_space<vmem>>, %arg4: memref<32x1xf32, #tpu.memory_space<vmem>>, %arg5: memref<1x32xf32, #tpu.memory_space<vmem>>, %arg6: memref<1x1xf32, #tpu.memory_space<vmem>>, %arg7: memref<2x1x256xf32, #tpu.memory_space<vmem>>) attributes {dimension_semantics = [#tpu.dimension_semantics<parallel>, #tpu.dimension_semantics<parallel>], iteration_bounds = array<i64: 1, 1>, scalar_prefetch = 0 : i64, scratch_operands = 0 : i64, tpu.core_type = #tpu.core_type<tc>, window_params = [{transform_indices = @transform_0, window_bounds = array<i64: 2, 4, 256>}, {pipeline_mode = #tpu.pipeline_mode<synchronous>, transform_indices = @transform_1, window_bounds = array<i64: 32, 4>}, {pipeline_mode = #tpu.pipeline_mode<synchronous>, transform_indices = @transform_2, window_bounds = array<i64: 32, 1>}, {pipeline_mode = #tpu.pipeline_mode<synchronous>, transform_indices = @transform_3, window_bounds = array<i64: 1, 32>}, {pipeline_mode = #tpu.pipeline_mode<synchronous>, transform_indices = @transform_4, window_bounds = array<i64: 1, 1>}, {transform_indices = @transform_5, window_bounds = array<i64: 2, 1, 256>}]} {
    %c0 = arith.constant 0 : index
    %c0_0 = arith.constant 0 : index
    %0 = vector.load %arg3[%c0, %c0_0] : memref<32x4xf32, #tpu.memory_space<vmem>>, vector<32x4xf32>
    %c0_1 = arith.constant 0 : index
    %c0_2 = arith.constant 0 : index
    %1 = vector.load %arg4[%c0_1, %c0_2] : memref<32x1xf32, #tpu.memory_space<vmem>>, vector<32x1xf32>
    %c0_3 = arith.constant 0 : index
    %c0_4 = arith.constant 0 : index
    %2 = vector.load %arg5[%c0_3, %c0_4] : memref<1x32xf32, #tpu.memory_space<vmem>>, vector<1x32xf32>
    %c0_5 = arith.constant 0 : index
    %c0_6 = arith.constant 0 : index
    %3 = vector.load %arg6[%c0_5, %c0_6] : memref<1x1xf32, #tpu.memory_space<vmem>>, vector<1x1xf32>
    %c0_7 = arith.constant 0 : index
    %c0_8 = arith.constant 0 : index
    %c0_9 = arith.constant 0 : index
    %4 = vector.load %arg2[%c0_7, %c0_8, %c0_9] : memref<2x4x256xf32, #tpu.memory_space<vmem>>, vector<1x4x256xf32>
    %5 = vector.shape_cast %4 : vector<1x4x256xf32> to vector<4x256xf32>
    %6 = vector.extract_strided_slice %0 {offsets = [0, 0], sizes = [32, 1], strides = [1, 1]} : vector<32x4xf32> to vector<32x1xf32>
    %7 = vector.extract_strided_slice %5 {offsets = [0, 0], sizes = [1, 256], strides = [1, 1]} : vector<4x256xf32> to vector<1x256xf32>
    %8 = vector.broadcast %6 : vector<32x1xf32> to vector<32x256xf32>
    %9 = vector.broadcast %7 : vector<1x256xf32> to vector<32x256xf32>
    %10 = arith.mulf %8, %9 : vector<32x256xf32>
    %11 = vector.extract_strided_slice %0 {offsets = [0, 1], sizes = [32, 1], strides = [1, 1]} : vector<32x4xf32> to vector<32x1xf32>
    %12 = vector.extract_strided_slice %5 {offsets = [1, 0], sizes = [1, 256], strides = [1, 1]} : vector<4x256xf32> to vector<1x256xf32>
    %13 = vector.broadcast %11 : vector<32x1xf32> to vector<32x256xf32>
    %14 = vector.broadcast %12 : vector<1x256xf32> to vector<32x256xf32>
    %15 = arith.mulf %13, %14 : vector<32x256xf32>
    %16 = arith.addf %10, %15 : vector<32x256xf32>
    %17 = vector.extract_strided_slice %0 {offsets = [0, 2], sizes = [32, 1], strides = [1, 1]} : vector<32x4xf32> to vector<32x1xf32>
    %18 = vector.extract_strided_slice %5 {offsets = [2, 0], sizes = [1, 256], strides = [1, 1]} : vector<4x256xf32> to vector<1x256xf32>
    %19 = vector.broadcast %17 : vector<32x1xf32> to vector<32x256xf32>
    %20 = vector.broadcast %18 : vector<1x256xf32> to vector<32x256xf32>
    %21 = arith.mulf %19, %20 : vector<32x256xf32>
    %22 = arith.addf %16, %21 : vector<32x256xf32>
    %23 = vector.extract_strided_slice %0 {offsets = [0, 3], sizes = [32, 1], strides = [1, 1]} : vector<32x4xf32> to vector<32x1xf32>
    %24 = vector.extract_strided_slice %5 {offsets = [3, 0], sizes = [1, 256], strides = [1, 1]} : vector<4x256xf32> to vector<1x256xf32>
    %25 = vector.broadcast %23 : vector<32x1xf32> to vector<32x256xf32>
    %26 = vector.broadcast %24 : vector<1x256xf32> to vector<32x256xf32>
    %27 = arith.mulf %25, %26 : vector<32x256xf32>
    %28 = arith.addf %22, %27 : vector<32x256xf32>
    %29 = vector.broadcast %1 : vector<32x1xf32> to vector<32x256xf32>
    %30 = arith.addf %28, %29 : vector<32x256xf32>
    %31 = math.tanh %30 : vector<32x256xf32>
    %cst = arith.constant dense<0.000000e+00> : vector<1x256xf32>
    %32 = tpu.matmul %2, %31, %cst {dimension_numbers = #tpu.dot_dimension_numbers<[1], [0], [0], [1], [0, 0, 1, 1], [], []>} : vector<1x32xf32>, vector<32x256xf32>, vector<1x256xf32> -> vector<1x256xf32>
    %33 = vector.broadcast %3 : vector<1x1xf32> to vector<1x256xf32>
    %34 = arith.addf %32, %33 : vector<1x256xf32>
    %c0_10 = arith.constant 0 : index
    %c0_11 = arith.constant 0 : index
    %c0_12 = arith.constant 0 : index
    %35 = vector.load %arg7[%c0_10, %c0_11, %c0_12] : memref<2x1x256xf32, #tpu.memory_space<vmem>>, vector<1x1x256xf32>
    %36 = vector.shape_cast %35 : vector<1x1x256xf32> to vector<1x256xf32>
    %37 = vector.shape_cast %34 : vector<1x256xf32> to vector<1x1x256xf32>
    tpu.vector_store %arg7[%c0_10, %c0_11, %c0_12], %37 {strides = array<i32>} : memref<2x1x256xf32, #tpu.memory_space<vmem>>, vector<1x1x256xf32>,
    %c1 = arith.constant 1 : index
    %c0_13 = arith.constant 0 : index
    %c0_14 = arith.constant 0 : index
    %38 = vector.load %arg2[%c1, %c0_13, %c0_14] : memref<2x4x256xf32, #tpu.memory_space<vmem>>, vector<1x4x256xf32>
    %39 = vector.shape_cast %38 : vector<1x4x256xf32> to vector<4x256xf32>
    %40 = vector.extract_strided_slice %0 {offsets = [0, 0], sizes = [32, 1], strides = [1, 1]} : vector<32x4xf32> to vector<32x1xf32>
    %41 = vector.extract_strided_slice %39 {offsets = [0, 0], sizes = [1, 256], strides = [1, 1]} : vector<4x256xf32> to vector<1x256xf32>
    %42 = vector.broadcast %40 : vector<32x1xf32> to vector<32x256xf32>
    %43 = vector.broadcast %41 : vector<1x256xf32> to vector<32x256xf32>
    %44 = arith.mulf %42, %43 : vector<32x256xf32>
    %45 = vector.extract_strided_slice %0 {offsets = [0, 1], sizes = [32, 1], strides = [1, 1]} : vector<32x4xf32> to vector<32x1xf32>
    %46 = vector.extract_strided_slice %39 {offsets = [1, 0], sizes = [1, 256], strides = [1, 1]} : vector<4x256xf32> to vector<1x256xf32>
    %47 = vector.broadcast %45 : vector<32x1xf32> to vector<32x256xf32>
    %48 = vector.broadcast %46 : vector<1x256xf32> to vector<32x256xf32>
    %49 = arith.mulf %47, %48 : vector<32x256xf32>
    %50 = arith.addf %44, %49 : vector<32x256xf32>
    %51 = vector.extract_strided_slice %0 {offsets = [0, 2], sizes = [32, 1], strides = [1, 1]} : vector<32x4xf32> to vector<32x1xf32>
    %52 = vector.extract_strided_slice %39 {offsets = [2, 0], sizes = [1, 256], strides = [1, 1]} : vector<4x256xf32> to vector<1x256xf32>
    %53 = vector.broadcast %51 : vector<32x1xf32> to vector<32x256xf32>
    %54 = vector.broadcast %52 : vector<1x256xf32> to vector<32x256xf32>
    %55 = arith.mulf %53, %54 : vector<32x256xf32>
    %56 = arith.addf %50, %55 : vector<32x256xf32>
    %57 = vector.extract_strided_slice %0 {offsets = [0, 3], sizes = [32, 1], strides = [1, 1]} : vector<32x4xf32> to vector<32x1xf32>
    %58 = vector.extract_strided_slice %39 {offsets = [3, 0], sizes = [1, 256], strides = [1, 1]} : vector<4x256xf32> to vector<1x256xf32>
    %59 = vector.broadcast %57 : vector<32x1xf32> to vector<32x256xf32>
    %60 = vector.broadcast %58 : vector<1x256xf32> to vector<32x256xf32>
    %61 = arith.mulf %59, %60 : vector<32x256xf32>
    %62 = arith.addf %56, %61 : vector<32x256xf32>
    %63 = vector.broadcast %1 : vector<32x1xf32> to vector<32x256xf32>
    %64 = arith.addf %62, %63 : vector<32x256xf32>
    %65 = math.tanh %64 : vector<32x256xf32>
    %cst_15 = arith.constant dense<0.000000e+00> : vector<1x256xf32>
    %66 = tpu.matmul %2, %65, %cst_15 {dimension_numbers = #tpu.dot_dimension_numbers<[1], [0], [0], [1], [0, 0, 1, 1], [], []>} : vector<1x32xf32>, vector<32x256xf32>, vector<1x256xf32> -> vector<1x256xf32>
    %67 = vector.broadcast %3 : vector<1x1xf32> to vector<1x256xf32>
    %68 = arith.addf %66, %67 : vector<1x256xf32>
    %c1_16 = arith.constant 1 : index
    %c0_17 = arith.constant 0 : index
    %c0_18 = arith.constant 0 : index
    %69 = vector.load %arg7[%c1_16, %c0_17, %c0_18] : memref<2x1x256xf32, #tpu.memory_space<vmem>>, vector<1x1x256xf32>
    %70 = vector.shape_cast %69 : vector<1x1x256xf32> to vector<1x256xf32>
    %71 = vector.shape_cast %68 : vector<1x256xf32> to vector<1x1x256xf32>
    tpu.vector_store %arg7[%c1_16, %c0_17, %c0_18], %71 {strides = array<i32>} : memref<2x1x256xf32, #tpu.memory_space<vmem>>, vector<1x1x256xf32>,
    return
  }
  func.func @transform_0(%arg0: i32, %arg1: i32) -> (i32, i32, i32) {
    %c0_i32 = arith.constant 0 : i32
    %c0_i32_0 = arith.constant 0 : i32
    return %arg0, %c0_i32, %arg1 : i32, i32, i32
  }
  func.func @transform_1(%arg0: i32, %arg1: i32) -> (i32, i32) {
    %c0_i32 = arith.constant 0 : i32
    %c0_i32_0 = arith.constant 0 : i32
    %c0_i32_1 = arith.constant 0 : i32
    return %c0_i32, %c0_i32_0 : i32, i32
  }
  func.func @transform_2(%arg0: i32, %arg1: i32) -> (i32, i32) {
    %c0_i32 = arith.constant 0 : i32
    %c0_i32_0 = arith.constant 0 : i32
    %c0_i32_1 = arith.constant 0 : i32
    return %c0_i32, %c0_i32_0 : i32, i32
  }
  func.func @transform_3(%arg0: i32, %arg1: i32) -> (i32, i32) {
    %c0_i32 = arith.constant 0 : i32
    %c0_i32_0 = arith.constant 0 : i32
    %c0_i32_1 = arith.constant 0 : i32
    return %c0_i32, %c0_i32_0 : i32, i32
  }
  func.func @transform_4(%arg0: i32, %arg1: i32) -> (i32, i32) {
    %c0_i32 = arith.constant 0 : i32
    %c0_i32_0 = arith.constant 0 : i32
    %c0_i32_1 = arith.constant 0 : i32
    return %c0_i32, %c0_i32_0 : i32, i32
  }
  func.func @transform_5(%arg0: i32, %arg1: i32) -> (i32, i32, i32) {
    %c0_i32 = arith.constant 0 : i32
    %c0_i32_0 = arith.constant 0 : i32
    return %arg0, %c0_i32, %arg1 : i32, i32, i32
  }
}

</mosaic_0001>

<llo_original>
// kernel: tpu_custom_call.1
$region0: #{tpu_custom_call.1}
  #allocation0 [shape = 'u32[]', space=smem, size = 0x4, offset = 0x4, fixed_abs, tag = 'smem constant byte address 0x4 - core index']
  #allocation1 [shape = 'u32[144,128]{1,0:T(1,128)}', space=vmem, size = 0x12000, scoped, tag = 'internal scratch']
  #allocation2 [shape = 'f32[1,1]{1,0:T(1,128)S(1)}', space=vmem, size = 0x200, scoped, tag = 'scoped memory for tpu_custom_call.1']
  %s0 = inlined_call_operand.vmem [shape: f32[2,4,256], index: 0, kind: input, shape index: {}]
  %s1 = inlined_call_operand.vmem [shape: f32[32,4], index: 1, kind: input, shape index: {}]
  %s2 = inlined_call_operand.vmem [shape: f32[32,1], index: 2, kind: input, shape index: {}]
  %s3 = inlined_call_operand.vmem [shape: f32[1,32], index: 3, kind: input, shape index: {}]
  %s4 = inlined_call_operand.<no memory space> [shape: f32[1,1], index: 4, kind: input, shape index: {}]
  %s5 = inlined_call_operand.hbm [shape: f32[2,1,256], index: 5, kind: output, shape index: {}]
  %s6 = sld [smem:[#allocation0]]
  $region30: #{tpu_custom_call.1} parent=0
    _
  %s8 = ssub.s32 1, %s6
  %s9 = scalar_select 0, %s8, %s6
  %v10 = vstv %s4
  %11 = vst [vmem:[#allocation2] sm:$0x1] %v10
  $region1: #{tpu_custom_call.1} parent=0
    #allocation3 [shape = 'u8[2048]{0}', space=vmem, size = 0x800, scoped, tag = 'output window, operand 0, single buffered']
    #allocation4 [shape = 's32[1]{0}', space=sflag, size = 0x4, scoped, tag = 'scoped memory for tpu_custom_call.1']
    %12 = vsyncpa [#allocation4], 0
    // Predicated region
    $region2: #{tpu_custom_call.1} parent=1 // pred_check
      _
    $region3: #{tpu_custom_call.1} parent=1 // pred_check_branch
      %14 = sbr.rel (0) target = $region5
    $region4: #{tpu_custom_call.1} parent=1 // pred_region
      _
    $region5: #{tpu_custom_call.1} parent=1 // pred_fallthru
      _
    // Predicated region
    $region6: #{tpu_custom_call.1} parent=1 // pred_check
      _
    $region7: #{tpu_custom_call.1} parent=1 // pred_check_branch
      %16 = sbr.rel (0) target = $region9
    $region8: #{tpu_custom_call.1} parent=1 // pred_region
      _
    $region9: #{tpu_custom_call.1} parent=1 // pred_fallthru
      _
    // Predicated region
    $region10: #{tpu_custom_call.1} parent=1 // pred_check
      _
    $region11: #{tpu_custom_call.1} parent=1 // pred_check_branch
      %18 = sbr.rel (0) target = $region13
    $region12: #{tpu_custom_call.1} parent=1 // pred_region
      _
    $region13: #{tpu_custom_call.1} parent=1 // pred_fallthru
      _
    // Predicated region
    $region14: #{tpu_custom_call.1} parent=1 // pred_check
      _
    $region15: #{tpu_custom_call.1} parent=1 // pred_check_branch
      %20 = sbr.rel (0) target = $region17
    $region16: #{tpu_custom_call.1} parent=1 // pred_region
      _
    $region17: #{tpu_custom_call.1} parent=1 // pred_fallthru
      _
    // Predicated region
    $region18: #{tpu_custom_call.1} parent=1 // pred_check
      _
    $region19: #{tpu_custom_call.1} parent=1 // pred_check_branch
      %22 = sbr.rel (0) target = $region21
    $region20: #{tpu_custom_call.1} parent=1 // pred_region
      _
    $region21: #{tpu_custom_call.1} parent=1 // pred_fallthru
      _
    %v23 = vld [vmem:[%s1] sm:$0xff]
    %v24 = vld [vmem:[%s1 + $0x8] sm:$0xff]
    %v25 = vld [vmem:[%s1 + $0x10] sm:$0xff]
    %v26 = vld [vmem:[%s1 + $0x18] sm:$0xff]
    %v27 = vld [vmem:[%s2] sm:$0xff]
    %v28 = vld [vmem:[%s2 + $0x8] sm:$0xff]
    %v29 = vld [vmem:[%s2 + $0x10] sm:$0xff]
    %v30 = vld [vmem:[%s2 + $0x18] sm:$0xff]
    %v31 = vld [vmem:[%s3] sm:$0x1]
    %v32 = vld [vmem:[#allocation2] sm:$0x1]
    %v33 = vld [vmem:[%s0] sm:$0xff]
    %35 = vset.pattern.permute.xlu0 0
    %36 = vperm.xlu0 %35, %v23
    %v37 = vpop.permute.xlu0 %36
    %40 = vset.pattern.permute.xlu0 0
    %41 = vperm.xlu0 %40, %v24
    %v42 = vpop.permute.xlu0 %41
    %45 = vset.pattern.permute.xlu0 0
    %46 = vperm.xlu0 %45, %v25
    %v47 = vpop.permute.xlu0 %46
    %50 = vset.pattern.permute.xlu0 0
    %51 = vperm.xlu0 %50, %v26
    %v52 = vpop.permute.xlu0 %51
    %v55 = vlaneseq
    %v56 = vshrl.u32 %v55, 7
    %v57 = vsub.s32 0, %v56
    %v58 = vrot.slane %v33, %v57
    %v59 = vlaneseq
    %v60 = vshrl.u32 %v59, 7
    %v61 = vsub.s32 4, %v60
    %v62 = vrot.slane %v33, %v61
    %v65 = vlaneseq
    %v66 = vshrl.u32 %v65, 7
    %v67 = vsub.s32 0, %v66
    %v68 = vrot.slane %v58, %v67
    %v69 = vlaneseq
    %v70 = vshrl.u32 %v69, 7
    %v71 = vsub.s32 0, %v70
    %v72 = vrot.slane %v62, %v71
    %v73 = vmul.f32 %v37, %v68
    %v74 = vmul.f32 %v37, %v72
    %v75 = vmul.f32 %v42, %v68
    %v76 = vmul.f32 %v42, %v72
    %v77 = vmul.f32 %v47, %v68
    %v78 = vmul.f32 %v47, %v72
    %v79 = vmul.f32 %v52, %v68
    %v80 = vmul.f32 %v52, %v72
    %81 = vset.pattern.permute.xlu0 1
    %82 = vperm.xlu0 %81, %v23
    %v83 = vpop.permute.xlu0 %82
    %85 = vset.pattern.permute.xlu0 1
    %86 = vperm.xlu0 %85, %v24
    %v87 = vpop.permute.xlu0 %86
    %89 = vset.pattern.permute.xlu0 1
    %90 = vperm.xlu0 %89, %v25
    %v91 = vpop.permute.xlu0 %90
    %93 = vset.pattern.permute.xlu0 1
    %94 = vperm.xlu0 %93, %v26
    %v95 = vpop.permute.xlu0 %94
    %v97 = vlaneseq
    %v98 = vshrl.u32 %v97, 7
    %v99 = vsub.s32 1, %v98
    %v100 = vrot.slane %v33, %v99
    %v101 = vlaneseq
    %v102 = vshrl.u32 %v101, 7
    %v103 = vsub.s32 5, %v102
    %v104 = vrot.slane %v33, %v103
    %v107 = vlaneseq
    %v108 = vshrl.u32 %v107, 7
    %v109 = vsub.s32 1, %v108
    %v110 = vrot.slane %v100, %v109
    %v111 = vlaneseq
    %v112 = vshrl.u32 %v111, 7
    %v113 = vsub.s32 1, %v112
    %v114 = vrot.slane %v104, %v113
    %v115 = vmul.f32 %v83, %v110
    %v116 = vmul.f32 %v83, %v114
    %v117 = vmul.f32 %v87, %v110
    %v118 = vmul.f32 %v87, %v114
    %v119 = vmul.f32 %v91, %v110
    %v120 = vmul.f32 %v91, %v114
    %v121 = vmul.f32 %v95, %v110
    %v122 = vmul.f32 %v95, %v114
    %v123 = vadd.f32 %v73, %v115
    %v124 = vadd.f32 %v74, %v116
    %v125 = vadd.f32 %v75, %v117
    %v126 = vadd.f32 %v76, %v118
    %v127 = vadd.f32 %v77, %v119
    %v128 = vadd.f32 %v78, %v120
    %v129 = vadd.f32 %v79, %v121
    %v130 = vadd.f32 %v80, %v122
    %131 = vset.pattern.permute.xlu0 2
    %132 = vperm.xlu0 %131, %v23
    %v133 = vpop.permute.xlu0 %132
    %135 = vset.pattern.permute.xlu0 2
    %136 = vperm.xlu0 %135, %v24
    %v137 = vpop.permute.xlu0 %136
    %139 = vset.pattern.permute.xlu0 2
    %140 = vperm.xlu0 %139, %v25
    %v141 = vpop.permute.xlu0 %140
    %143 = vset.pattern.permute.xlu0 2
    %144 = vperm.xlu0 %143, %v26
    %v145 = vpop.permute.xlu0 %144
    %v147 = vlaneseq
    %v148 = vshrl.u32 %v147, 7
    %v149 = vsub.s32 2, %v148
    %v150 = vrot.slane %v33, %v149
    %v151 = vlaneseq
    %v152 = vshrl.u32 %v151, 7
    %v153 = vsub.s32 6, %v152
    %v154 = vrot.slane %v33, %v153
    %v157 = vlaneseq
    %v158 = vshrl.u32 %v157, 7
    %v159 = vsub.s32 2, %v158
    %v160 = vrot.slane %v150, %v159
    %v161 = vlaneseq
    %v162 = vshrl.u32 %v161, 7
    %v163 = vsub.s32 2, %v162
    %v164 = vrot.slane %v154, %v163
    %v165 = vmul.f32 %v133, %v160
    %v166 = vmul.f32 %v133, %v164
    %v167 = vmul.f32 %v137, %v160
    %v168 = vmul.f32 %v137, %v164
    %v169 = vmul.f32 %v141, %v160
    %v170 = vmul.f32 %v141, %v164
    %v171 = vmul.f32 %v145, %v160
    %v172 = vmul.f32 %v145, %v164
    %v173 = vadd.f32 %v123, %v165
    %v174 = vadd.f32 %v124, %v166
    %v175 = vadd.f32 %v125, %v167
    %v176 = vadd.f32 %v126, %v168
    %v177 = vadd.f32 %v127, %v169
    %v178 = vadd.f32 %v128, %v170
    %v179 = vadd.f32 %v129, %v171
    %v180 = vadd.f32 %v130, %v172
    %181 = vset.pattern.permute.xlu0 3
    %182 = vperm.xlu0 %181, %v23
    %v183 = vpop.permute.xlu0 %182
    %185 = vset.pattern.permute.xlu0 3
    %186 = vperm.xlu0 %185, %v24
    %v187 = vpop.permute.xlu0 %186
    %189 = vset.pattern.permute.xlu0 3
    %190 = vperm.xlu0 %189, %v25
    %v191 = vpop.permute.xlu0 %190
    %193 = vset.pattern.permute.xlu0 3
    %194 = vperm.xlu0 %193, %v26
    %v195 = vpop.permute.xlu0 %194
    %v197 = vlaneseq
    %v198 = vshrl.u32 %v197, 7
    %v199 = vsub.s32 3, %v198
    %v200 = vrot.slane %v33, %v199
    %v201 = vlaneseq
    %v202 = vshrl.u32 %v201, 7
    %v203 = vsub.s32 7, %v202
    %v204 = vrot.slane %v33, %v203
    %v207 = vlaneseq
    %v208 = vshrl.u32 %v207, 7
    %v209 = vsub.s32 3, %v208
    %v210 = vrot.slane %v200, %v209
    %v211 = vlaneseq
    %v212 = vshrl.u32 %v211, 7
    %v213 = vsub.s32 3, %v212
    %v214 = vrot.slane %v204, %v213
    %v215 = vmul.f32 %v183, %v210
    %v216 = vmul.f32 %v183, %v214
    %v217 = vmul.f32 %v187, %v210
    %v218 = vmul.f32 %v187, %v214
    %v219 = vmul.f32 %v191, %v210
    %v220 = vmul.f32 %v191, %v214
    %v221 = vmul.f32 %v195, %v210
    %v222 = vmul.f32 %v195, %v214
    %v223 = vadd.f32 %v173, %v215
    %v224 = vadd.f32 %v174, %v216
    %v225 = vadd.f32 %v175, %v217
    %v226 = vadd.f32 %v176, %v218
    %v227 = vadd.f32 %v177, %v219
    %v228 = vadd.f32 %v178, %v220
    %v229 = vadd.f32 %v179, %v221
    %v230 = vadd.f32 %v180, %v222
    %232 = vset.pattern.permute.xlu0 0
    %233 = vperm.xlu0 %232, %v27
    %v234 = vpop.permute.xlu0 %233
    %237 = vset.pattern.permute.xlu0 0
    %238 = vperm.xlu0 %237, %v28
    %v239 = vpop.permute.xlu0 %238
    %242 = vset.pattern.permute.xlu0 0
    %243 = vperm.xlu0 %242, %v29
    %v244 = vpop.permute.xlu0 %243
    %247 = vset.pattern.permute.xlu0 0
    %248 = vperm.xlu0 %247, %v30
    %v249 = vpop.permute.xlu0 %248
    %v251 = vadd.f32 %v223, %v234
    %v252 = vadd.f32 %v224, %v234
    %v253 = vadd.f32 %v225, %v239
    %v254 = vadd.f32 %v226, %v239
    %v255 = vadd.f32 %v227, %v244
    %v256 = vadd.f32 %v228, %v244
    %v257 = vadd.f32 %v229, %v249
    %v258 = vadd.f32 %v230, %v249
    %v259 = vtanh.pop %v251
    %v260 = vtanh.pop %v252
    %v261 = vtanh.pop %v253
    %v262 = vtanh.pop %v254
    %v263 = vtanh.pop %v255
    %v264 = vtanh.pop %v256
    %v265 = vtanh.pop %v257
    %v266 = vtanh.pop %v258
    %268 = vset.pattern.permute.xlu0 0
    %269 = vperm.xlu0 %268, %v32
    %v270 = vpop.permute.xlu0 %269
    %v272 = vlaneseq
    %v273 = vshrl.u32 %v272, 7
    %v274 = vsub.s32 0, %v273
    %v275 = vrot.slane %v270, %v274
    %vm276 = vcmask 261120
    %v278 = vsel %vm276, %v31, 0
    %280 = vmatprep.subr.mxu0 %v260
    %281 = vmatpush1.msra.mxu0 %v259
    %282 = vmatprep.subr.mxu0 %v262
    %283 = vmatpush1.msra.mxu0 %v261
    %284 = vmatprep.subr.mxu0 %v264
    %285 = vmatpush1.msra.mxu0 %v263
    %286 = vmatprep.subr.mxu0 %v266
    %287 = vmatpush1.msra.mxu0 %v265
    %288 = vmatprep.subr.mxu0 0.0
    %289 = vmatpush1.msra.mxu0 0.0
    %290 = vmatprep.subr.mxu0 0.0
    %291 = vmatpush1.msra.mxu0 0.0
    %292 = vmatprep.subr.mxu0 0.0
    %293 = vmatpush1.msra.mxu0 0.0
    %294 = vmatprep.subr.mxu0 0.0
    %295 = vmatpush1.msra.mxu0 0.0
    %296 = vmatprep.subr.mxu0 0.0
    %297 = vmatpush1.msra.mxu0 0.0
    %298 = vmatprep.subr.mxu0 0.0
    %299 = vmatpush1.msra.mxu0 0.0
    %300 = vmatprep.subr.mxu0 0.0
    %301 = vmatpush1.msra.mxu0 0.0
    %302 = vmatprep.subr.mxu0 0.0
    %303 = vmatpush1.msra.mxu0 0.0
    %304 = vmatprep.subr.mxu0 0.0
    %305 = vmatpush1.msra.mxu0 0.0
    %306 = vmatprep.subr.mxu0 0.0
    %307 = vmatpush1.msra.mxu0 0.0
    %308 = vmatprep.subr.mxu0 0.0
    %309 = vmatpush1.msra.mxu0 0.0
    %310 = vmatprep.subr.mxu0 0.0
    %311 = vmatpush1.msra.mxu0 0.0
    %312 = vmatprep.subr.mxu0 0.0
    %313 = vmatpush1.msra.mxu0 0.0
    %314 = vmatprep.subr.mxu0 0.0
    %315 = vmatpush1.msra.mxu0 0.0
    %316 = vmatprep.subr.mxu0 0.0
    %317 = vmatpush1.msra.mxu0 0.0
    %318 = vmatprep.subr.mxu0 0.0
    %319 = vmatpush1.msra.mxu0 0.0
    %320 = vmatprep.subr.mxu0 0.0
    %321 = vmatpush1.msra.mxu0 0.0
    %322 = vmatprep.subr.mxu0 0.0
    %323 = vmatpush1.msra.mxu0 0.0
    %324 = vmatprep.subr.mxu0 0.0
    %325 = vmatpush1.msra.mxu0 0.0
    %326 = vmatprep.subr.mxu0 0.0
    %327 = vmatpush1.msra.mxu0 0.0
    %328 = vmatprep.subr.mxu0 0.0
    %329 = vmatpush1.msra.mxu0 0.0
    %330 = vmatprep.subr.mxu0 0.0
    %331 = vmatpush1.msra.mxu0 0.0
    %332 = vmatprep.subr.mxu0 0.0
    %333 = vmatpush1.msra.mxu0 0.0
    %334 = vmatprep.subr.mxu0 0.0
    %335 = vmatpush1.msra.mxu0 0.0
    %336 = vmatprep.subr.mxu0 0.0
    %337 = vmatpush1.msra.mxu0 0.0
    %338 = vmatprep.subr.mxu0 0.0
    %339 = vmatpush1.msra.mxu0 0.0
    %340 = vmatprep.subr.mxu0 0.0
    %341 = vmatpush1.msra.mxu0 0.0
    %342 = vmatprep.subr.mxu0 0.0
    %343 = vmatpush1.msra.mxu0 0.0
    %344 = vmatprep.mubr.f32.mxu0 0.0
    %345 = vmatmul.mubr.f32.gmra.mrb[0].mxu0 %v278
    %v346 = vpop.f32.mrb[0].mxu0
    %v347 = vadd.f32 %v275, %v346
    %v348 = vpop.f32.mrb[0].mxu0
    %v349 = vadd.f32 %v275, %v348
    %350 = vdwg.mxu0
    %v353 = vcombine.low %v347, %v349
    %v355 = vunpack.c.l.s4 1966171168
    %v356 = vunpack.c.0.s8 %v355
    %v357 = vlaneseq
    %v358 = vshrl.u32 %v357, 7
    %v359 = vsub.s32 %v356, %v358
    %v360 = vrot.slane %v353, %v359
    %v362 = vunpack.c.l.s4 1966171168
    %v363 = vunpack.c.0.s8 %v362
    %v364 = vlaneseq
    %v365 = vshrl.u32 %v364, 7
    %v366 = vsub.s32 %v363, %v365
    %v367 = vrot.slane %v360, %v366
    %v369 = vlaneseq
    %vm370 = vcmp.ge.s32.totalorder %v369, 0
    %vm371 = vcmp.lt.s32.totalorder %v369, 256
    %vm372 = vmand %vm370, %vm371
    %373 = vst.msk [vmem:[#allocation3] sm:$0x3] %vm372, %v367
    %s374 = scalar_lea.vmem %s0, 8
    %v375 = vld [vmem:[%s374] sm:$0xff]
    %v377 = vlaneseq
    %v378 = vshrl.u32 %v377, 7
    %v379 = vsub.s32 0, %v378
    %v380 = vrot.slane %v375, %v379
    %v381 = vlaneseq
    %v382 = vshrl.u32 %v381, 7
    %v383 = vsub.s32 4, %v382
    %v384 = vrot.slane %v375, %v383
    %v387 = vlaneseq
    %v388 = vshrl.u32 %v387, 7
    %v389 = vsub.s32 0, %v388
    %v390 = vrot.slane %v380, %v389
    %v391 = vlaneseq
    %v392 = vshrl.u32 %v391, 7
    %v393 = vsub.s32 0, %v392
    %v394 = vrot.slane %v384, %v393
    %v395 = vmul.f32 %v37, %v390
    %v396 = vmul.f32 %v37, %v394
    %v397 = vmul.f32 %v42, %v390
    %v398 = vmul.f32 %v42, %v394
    %v399 = vmul.f32 %v47, %v390
    %v400 = vmul.f32 %v47, %v394
    %v401 = vmul.f32 %v52, %v390
    %v402 = vmul.f32 %v52, %v394
    %v403 = vlaneseq
    %v404 = vshrl.u32 %v403, 7
    %v405 = vsub.s32 1, %v404
    %v406 = vrot.slane %v375, %v405
    %v407 = vlaneseq
    %v408 = vshrl.u32 %v407, 7
    %v409 = vsub.s32 5, %v408
    %v410 = vrot.slane %v375, %v409
    %v413 = vlaneseq
    %v414 = vshrl.u32 %v413, 7
    %v415 = vsub.s32 1, %v414
    %v416 = vrot.slane %v406, %v415
    %v417 = vlaneseq
    %v418 = vshrl.u32 %v417, 7
    %v419 = vsub.s32 1, %v418
    %v420 = vrot.slane %v410, %v419
    %v421 = vmul.f32 %v83, %v416
    %v422 = vmul.f32 %v83, %v420
    %v423 = vmul.f32 %v87, %v416
    %v424 = vmul.f32 %v87, %v420
    %v425 = vmul.f32 %v91, %v416
    %v426 = vmul.f32 %v91, %v420
    %v427 = vmul.f32 %v95, %v416
    %v428 = vmul.f32 %v95, %v420
    %v429 = vadd.f32 %v395, %v421
    %v430 = vadd.f32 %v396, %v422
    %v431 = vadd.f32 %v397, %v423
    %v432 = vadd.f32 %v398, %v424
    %v433 = vadd.f32 %v399, %v425
    %v434 = vadd.f32 %v400, %v426
    %v435 = vadd.f32 %v401, %v427
    %v436 = vadd.f32 %v402, %v428
    %v437 = vlaneseq
    %v438 = vshrl.u32 %v437, 7
    %v439 = vsub.s32 2, %v438
    %v440 = vrot.slane %v375, %v439
    %v441 = vlaneseq
    %v442 = vshrl.u32 %v441, 7
    %v443 = vsub.s32 6, %v442
    %v444 = vrot.slane %v375, %v443
    %v447 = vlaneseq
    %v448 = vshrl.u32 %v447, 7
    %v449 = vsub.s32 2, %v448
    %v450 = vrot.slane %v440, %v449
    %v451 = vlaneseq
    %v452 = vshrl.u32 %v451, 7
    %v453 = vsub.s32 2, %v452
    %v454 = vrot.slane %v444, %v453
    %v455 = vmul.f32 %v133, %v450
    %v456 = vmul.f32 %v133, %v454
    %v457 = vmul.f32 %v137, %v450
    %v458 = vmul.f32 %v137, %v454
    %v459 = vmul.f32 %v141, %v450
    %v460 = vmul.f32 %v141, %v454
    %v461 = vmul.f32 %v145, %v450
    %v462 = vmul.f32 %v145, %v454
    %v463 = vadd.f32 %v429, %v455
    %v464 = vadd.f32 %v430, %v456
    %v465 = vadd.f32 %v431, %v457
    %v466 = vadd.f32 %v432, %v458
    %v467 = vadd.f32 %v433, %v459
    %v468 = vadd.f32 %v434, %v460
    %v469 = vadd.f32 %v435, %v461
    %v470 = vadd.f32 %v436, %v462
    %v471 = vlaneseq
    %v472 = vshrl.u32 %v471, 7
    %v473 = vsub.s32 3, %v472
    %v474 = vrot.slane %v375, %v473
    %v475 = vlaneseq
    %v476 = vshrl.u32 %v475, 7
    %v477 = vsub.s32 7, %v476
    %v478 = vrot.slane %v375, %v477
    %v481 = vlaneseq
    %v482 = vshrl.u32 %v481, 7
    %v483 = vsub.s32 3, %v482
    %v484 = vrot.slane %v474, %v483
    %v485 = vlaneseq
    %v486 = vshrl.u32 %v485, 7
    %v487 = vsub.s32 3, %v486
    %v488 = vrot.slane %v478, %v487
    %v489 = vmul.f32 %v183, %v484
    %v490 = vmul.f32 %v183, %v488
    %v491 = vmul.f32 %v187, %v484
    %v492 = vmul.f32 %v187, %v488
    %v493 = vmul.f32 %v191, %v484
    %v494 = vmul.f32 %v191, %v488
    %v495 = vmul.f32 %v195, %v484
    %v496 = vmul.f32 %v195, %v488
    %v497 = vadd.f32 %v463, %v489
    %v498 = vadd.f32 %v464, %v490
    %v499 = vadd.f32 %v465, %v491
    %v500 = vadd.f32 %v466, %v492
    %v501 = vadd.f32 %v467, %v493
    %v502 = vadd.f32 %v468, %v494
    %v503 = vadd.f32 %v469, %v495
    %v504 = vadd.f32 %v470, %v496
    %v505 = vadd.f32 %v497, %v234
    %v506 = vadd.f32 %v498, %v234
    %v507 = vadd.f32 %v499, %v239
    %v508 = vadd.f32 %v500, %v239
    %v509 = vadd.f32 %v501, %v244
    %v510 = vadd.f32 %v502, %v244
    %v511 = vadd.f32 %v503, %v249
    %v512 = vadd.f32 %v504, %v249
    %v513 = vtanh.pop %v505
    %v514 = vtanh.pop %v506
    %v515 = vtanh.pop %v507
    %v516 = vtanh.pop %v508
    %v517 = vtanh.pop %v509
    %v518 = vtanh.pop %v510
    %v519 = vtanh.pop %v511
    %v520 = vtanh.pop %v512
    %521 = vmatprep.subr.mxu0 %v514
    %522 = vmatpush1.msra.mxu0 %v513
    %523 = vmatprep.subr.mxu0 %v516
    %524 = vmatpush1.msra.mxu0 %v515
    %525 = vmatprep.subr.mxu0 %v518
    %526 = vmatpush1.msra.mxu0 %v517
    %527 = vmatprep.subr.mxu0 %v520
    %528 = vmatpush1.msra.mxu0 %v519
    %529 = vmatprep.subr.mxu0 0.0
    %530 = vmatpush1.msra.mxu0 0.0
    %531 = vmatprep.subr.mxu0 0.0
    %532 = vmatpush1.msra.mxu0 0.0
    %533 = vmatprep.subr.mxu0 0.0
    %534 = vmatpush1.msra.mxu0 0.0
    %535 = vmatprep.subr.mxu0 0.0
    %536 = vmatpush1.msra.mxu0 0.0
    %537 = vmatprep.subr.mxu0 0.0
    %538 = vmatpush1.msra.mxu0 0.0
    %539 = vmatprep.subr.mxu0 0.0
    %540 = vmatpush1.msra.mxu0 0.0
    %541 = vmatprep.subr.mxu0 0.0
    %542 = vmatpush1.msra.mxu0 0.0
    %543 = vmatprep.subr.mxu0 0.0
    %544 = vmatpush1.msra.mxu0 0.0
    %545 = vmatprep.subr.mxu0 0.0
    %546 = vmatpush1.msra.mxu0 0.0
    %547 = vmatprep.subr.mxu0 0.0
    %548 = vmatpush1.msra.mxu0 0.0
    %549 = vmatprep.subr.mxu0 0.0
    %550 = vmatpush1.msra.mxu0 0.0
    %551 = vmatprep.subr.mxu0 0.0
    %552 = vmatpush1.msra.mxu0 0.0
    %553 = vmatprep.subr.mxu0 0.0
    %554 = vmatpush1.msra.mxu0 0.0
    %555 = vmatprep.subr.mxu0 0.0
    %556 = vmatpush1.msra.mxu0 0.0
    %557 = vmatprep.subr.mxu0 0.0
    %558 = vmatpush1.msra.mxu0 0.0
    %559 = vmatprep.subr.mxu0 0.0
    %560 = vmatpush1.msra.mxu0 0.0
    %561 = vmatprep.subr.mxu0 0.0
    %562 = vmatpush1.msra.mxu0 0.0
    %563 = vmatprep.subr.mxu0 0.0
    %564 = vmatpush1.msra.mxu0 0.0
    %565 = vmatprep.subr.mxu0 0.0
    %566 = vmatpush1.msra.mxu0 0.0
    %567 = vmatprep.subr.mxu0 0.0
    %568 = vmatpush1.msra.mxu0 0.0
    %569 = vmatprep.subr.mxu0 0.0
    %570 = vmatpush1.msra.mxu0 0.0
    %571 = vmatprep.subr.mxu0 0.0
    %572 = vmatpush1.msra.mxu0 0.0
    %573 = vmatprep.subr.mxu0 0.0
    %574 = vmatpush1.msra.mxu0 0.0
    %575 = vmatprep.subr.mxu0 0.0
    %576 = vmatpush1.msra.mxu0 0.0
    %577 = vmatprep.subr.mxu0 0.0
    %578 = vmatpush1.msra.mxu0 0.0
    %579 = vmatprep.subr.mxu0 0.0
    %580 = vmatpush1.msra.mxu0 0.0
    %581 = vmatprep.subr.mxu0 0.0
    %582 = vmatpush1.msra.mxu0 0.0
    %583 = vmatprep.subr.mxu0 0.0
    %584 = vmatpush1.msra.mxu0 0.0
    %585 = vmatprep.mubr.f32.mxu0 0.0
    %586 = vmatmul.mubr.f32.gmra.mrb[0].mxu0 %v278
    %v587 = vpop.f32.mrb[0].mxu0
    %v588 = vadd.f32 %v275, %v587
    %v589 = vpop.f32.mrb[0].mxu0
    %v590 = vadd.f32 %v275, %v589
    %591 = vdwg.mxu0
    %v594 = vcombine.low %v588, %v590
    %v596 = vunpack.c.l.s4 1966171168
    %v597 = vunpack.c.0.s8 %v596
    %v598 = vlaneseq
    %v599 = vshrl.u32 %v598, 7
    %v600 = vsub.s32 %v597, %v599
    %v601 = vrot.slane %v594, %v600
    %v603 = vunpack.c.l.s4 1966171168
    %v604 = vunpack.c.0.s8 %v603
    %v605 = vlaneseq
    %v606 = vshrl.u32 %v605, 7
    %v607 = vsub.s32 %v604, %v606
    %v608 = vrot.slane %v601, %v607
    %s610 = scalar_lea.vmem [#allocation3], 2
    %611 = vst.msk [vmem:[%s610] sm:$0x3] %vm372, %v608
    // Predicated region
    $region22: #{tpu_custom_call.1} parent=1 // pred_check
      _
    $region23: #{tpu_custom_call.1} parent=1 // pred_check_branch
      %613 = sbr.rel (0) target = $region25
    $region24: #{tpu_custom_call.1} parent=1 // pred_region
      %s615 = ssub.s32 64, 64
      %616 = vsyncadd [#allocation4], %s615
      %s617 = sshll.u32 [#allocation3], 4
      %s618 = int_to_ptr.vmem [resolvable:$true] %s617
      %623 = dma.vmem_to_hbm [thread:$0]  %s618, 64, %s5, [#allocation4], 32, 32, 2
    $region25: #{tpu_custom_call.1} parent=1 // pred_fallthru
      _
    // Predicated region
    $region26: #{tpu_custom_call.1} parent=1 // pred_check
      _
    $region27: #{tpu_custom_call.1} parent=1 // pred_check_branch
      %625 = sbr.rel (0) target = $region29
    $region28: #{tpu_custom_call.1} parent=1 // pred_region
      %626 = dma.done [#allocation4], 64
    $region29: #{tpu_custom_call.1} parent=1 // pred_fallthru
      _
    %627 = vsyncpa [#allocation4], 1

</llo_original>
